<compile_context>
chip_gen: v7x
topology: tpu7x:2x2x1
jax: 0.10.0
libtpu: 0.0.40
codegen_flags: <defaults>
</compile_context>

<pallas_src>
import functools

import jax
import jax.numpy as jnp
from jax import lax
from jax.experimental import pallas as pl
from jax.experimental.pallas import tpu as pltpu

LANE = 128


def _round_up(x, m):
    return ((x + m - 1) // m) * m


# ---------------------------------------------------------------------------
# Fused Pallas kernel: no grid, hops run as an unrolled in-kernel loop
# ---------------------------------------------------------------------------
def _egnn_fused_kernel(h0_ref, e_ref, src_oh_ref, dst_oh_ref, indeg_ref,
                       w_ref, b_ref, s_ref, fcw_ref, fcb_ref, out_ref,
                       *, num_hops):
    # One-hot gather/scatter operators are stored in bf16 (0/1 exact); cast once
    # so every dot below is f32 (exact selection/sum for the 0/1 operands).
    src_oh = src_oh_ref[...].astype(jnp.float32)      # (Ep, Np)
    dst_oh = dst_oh_ref[...].astype(jnp.float32)      # (Np, Ep)
    e_b = e_ref[...]                                   # (Ep, K) lane-dense edge weights
    s_mat = s_ref[...]                                 # (K, D)  stacked-identity block sum
    indeg = indeg_ref[...]                             # (Np, 1)

    def hop(l, h):
        # Node-level linear map FIRST: (Np, D) @ (D, K) — O(N) MXU work instead
        # of the per-edge O(E) matmul of the naive formulation.
        z = jnp.dot(h, w_ref[l], preferred_element_type=jnp.float32)          # (Np, K)
        # Gather node blocks onto edges, weight the p lane-blocks by e (lane-
        # dense VPU multiply), scatter-sum to destinations, collapse p blocks.
        z_src = jnp.dot(src_oh, z, preferred_element_type=jnp.float32)        # (Ep, K)
        u = jnp.dot(dst_oh, e_b * z_src, preferred_element_type=jnp.float32)  # (Np, K)
        agg = jnp.dot(u, s_mat, preferred_element_type=jnp.float32)           # (Np, D)
        # Post-scatter bias: indeg * b keeps zero-in-degree nodes at exactly 0.
        return jnp.maximum(agg + indeg * b_ref[l], 0.0)

    h = lax.fori_loop(0, num_hops, hop, h0_ref[...], unroll=True)

    # Final FC fused in.
    out_ref[...] = (jnp.dot(h, fcw_ref[...], preferred_element_type=jnp.float32)
                    + fcb_ref[...])


# ---------------------------------------------------------------------------
# Wrapper: pad to lane width, pack per-hop weights, call the fused kernel
# ---------------------------------------------------------------------------
def egnn_forward(layer_params, fc_w, fc_b, features, edge_features, src, dst):
    N, node_in = features.shape
    E, P = edge_features.shape
    hidden = layer_params[0][0].shape[1]
    out_dim = fc_w.shape[1]
    L = len(layer_params)

    D = _round_up(max(node_in, hidden), LANE)   # node-state width (lane padded)
    K = _round_up(P * hidden, LANE)             # tight-packed message width
    Dout = _round_up(out_dim, LANE)
    Np = _round_up(N, 8)
    Ep = _round_up(E, 8)

    # Padded initial node state.
    h0 = jnp.zeros((Np, D), jnp.float32).at[:N, :node_in].set(features)

    # Lane-dense pre-broadcast edge weights: block i (true hidden width) carries
    # e[:, i]; padding rows/columns stay zero.
    e_b = jnp.zeros((Ep, K), jnp.float32)
    for i in range(P):
        e_b = e_b.at[:E, i * hidden:(i + 1) * hidden].set(
            jnp.broadcast_to(edge_features[:, i:i + 1], (E, hidden)))

    # Dense one-hot gather/scatter operators in bf16 (0/1 values are exact).
    src_oh = jnp.zeros((Ep, Np), jnp.bfloat16).at[jnp.arange(E), src].set(1.0)
    dst_oh = jnp.zeros((Np, Ep), jnp.bfloat16).at[dst, jnp.arange(E)].set(1.0)
    indeg = jnp.zeros((Np, 1), jnp.float32).at[dst, 0].add(1.0)

    # Per-hop weights packed node-level and tight: Wn[:in_l, i*H:(i+1)*H] = W_i.
    w_list, b_list = [], []
    for (W, b) in layer_params:
        in_dim = W.shape[0] // P
        W3 = W.reshape(P, in_dim, hidden)
        Wn = jnp.zeros((D, K), jnp.float32)
        for i in range(P):
            Wn = Wn.at[:in_dim, i * hidden:(i + 1) * hidden].set(W3[i])
        w_list.append(Wn)
        b_list.append(jnp.zeros((1, D), jnp.float32).at[0, :hidden].set(b))
    w_stack = jnp.stack(w_list)                   # (L, D, K)
    b_stack = jnp.stack(b_list)                   # (L, 1, D)

    # Block-collapse matrix: S[i*hidden + j, j] = 1 (sums the p lane-blocks).
    s_mat = jnp.zeros((K, D), jnp.float32)
    eye_h = jnp.eye(hidden, dtype=jnp.float32)
    for i in range(P):
        s_mat = s_mat.at[i * hidden:(i + 1) * hidden, :hidden].set(eye_h)

    fcw = jnp.zeros((D, Dout), jnp.float32).at[:hidden, :out_dim].set(fc_w)
    fcb = jnp.zeros((1, Dout), jnp.float32).at[0, :out_dim].set(fc_b)

    # Advisory cost estimate (post-restructure: node-level matmul, tight K).
    flops_per_hop = (2 * Np * D * K          # h @ W_node
                     + 2 * Ep * Np * K       # gather (src_oh @ Z)
                     + Ep * K                # e-weighting (VPU)
                     + 2 * Np * Ep * K       # scatter (dst_oh @ T)
                     + 2 * Np * K * D)       # block collapse (@ S)
    flops = L * flops_per_hop + 2 * Np * D * Dout
    bytes_accessed = (4 * (h0.size + e_b.size + indeg.size + w_stack.size
                           + b_stack.size + s_mat.size + fcw.size + fcb.size
                           + Np * Dout)
                      + 2 * (src_oh.size + dst_oh.size))

    vmem = pl.BlockSpec(memory_space=pltpu.MemorySpace.VMEM)  # whole-array, VMEM-resident
    kernel = functools.partial(_egnn_fused_kernel, num_hops=L)
    out = pl.pallas_call(
        kernel,
        out_shape=jax.ShapeDtypeStruct((Np, Dout), jnp.float32),
        in_specs=[vmem] * 10,
        out_specs=vmem,
        compiler_params=pltpu.CompilerParams(
            vmem_limit_bytes=32 * 1024 * 1024),   # explicit budget (v7x: 64 MiB phys)
        cost_estimate=pl.CostEstimate(flops=flops, transcendentals=0,
                                      bytes_accessed=bytes_accessed),
    )(h0, e_b, src_oh, dst_oh, indeg, w_stack, b_stack, s_mat, fcw, fcb)

    return out[:N, :out_dim]


# ---------------------------------------------------------------------------
# Deterministic parameter init (mirrors torch nn.Linear default init)
# ---------------------------------------------------------------------------
def init_linear(key, in_dim, out_dim):
    kw, kb = jax.random.split(key)
    bound = 1.0 / jnp.sqrt(jnp.float32(in_dim))
    W = jax.random.uniform(kw, (in_dim, out_dim), jnp.float32, -bound, bound)
    b = jax.random.uniform(kb, (out_dim,), jnp.float32, -bound, bound)
    return W, b


# ---------------------------------------------------------------------------
# Main
# ---------------------------------------------------------------------------
if __name__ == "__main__":
    N, E = 8, 16                        # nodes, edges
    node_in_dim, edge_in_dim = 4, 3
    hidden_dim, out_dim, num_hops = 32, 8, 2

    key = jax.random.PRNGKey(0)
    keys = jax.random.split(key, 4 + num_hops + 1)

    features = jax.random.normal(keys[0], (N, node_in_dim), jnp.float32)
    edge_features = jax.random.normal(keys[1], (E, edge_in_dim), jnp.float32)
    src = jax.random.randint(keys[2], (E,), 0, N)
    dst = jax.random.randint(keys[3], (E,), 0, N)

    # EGNN params: layer 0 maps p*node_in -> hidden, others p*hidden -> hidden.
    layer_params = []
    in_d = node_in_dim
    for i in range(num_hops):
        W, b = init_linear(keys[4 + i], edge_in_dim * in_d, hidden_dim)
        layer_params.append((W, b))
        in_d = hidden_dim
    fc_w, fc_b = init_linear(keys[4 + num_hops], hidden_dim, out_dim)

    logits = egnn_forward(layer_params, fc_w, fc_b, features, edge_features,
                          src, dst)
    logits = jax.block_until_ready(logits)

    # Pure-JAX reference (same semantics as the DGL update_all + fn.sum path).
    def ref_layer(h, e, W, b):
        h_src = h[src]                                            # (E, in)
        m = (e[:, :, None] * h_src[:, None, :]).reshape(E, -1) @ W + b
        return jnp.zeros((N, W.shape[1]), jnp.float32).at[dst].add(m)

    h_ref = features
    for (W, b) in layer_params:
        h_ref = jax.nn.relu(ref_layer(h_ref, edge_features, W, b))
    ref = h_ref @ fc_w + fc_b

    assert logits.shape == (N, out_dim)
    assert jnp.allclose(logits, ref, atol=1e-4, rtol=1e-4), "mismatch vs reference"
    print("KERNEL_OK")
</pallas_src>

<mosaic_0001>
module attributes {stable_mosaic.version = 11 : i64} {
  func.func @_egnn_fused_kernel(%arg0: memref<8x128xf32, #tpu.memory_space<vmem>>, %arg1: memref<16x128xf32, #tpu.memory_space<vmem>>, %arg2: memref<16x8xbf16, #tpu.memory_space<vmem>>, %arg3: memref<8x16xbf16, #tpu.memory_space<vmem>>, %arg4: memref<8x1xf32, #tpu.memory_space<vmem>>, %arg5: memref<2x128x128xf32, #tpu.memory_space<vmem>>, %arg6: memref<2x1x128xf32, #tpu.memory_space<vmem>>, %arg7: memref<128x128xf32, #tpu.memory_space<vmem>>, %arg8: memref<128x128xf32, #tpu.memory_space<vmem>>, %arg9: memref<1x128xf32, #tpu.memory_space<vmem>>, %arg10: memref<8x128xf32, #tpu.memory_space<vmem>>) attributes {dimension_semantics = [], scalar_prefetch = 0 : i64, scratch_operands = 0 : i64, tpu.core_type = #tpu.core_type<tc>} {
    %c0 = arith.constant 0 : index
    %c0_0 = arith.constant 0 : index
    %0 = vector.load %arg2[%c0, %c0_0] : memref<16x8xbf16, #tpu.memory_space<vmem>>, vector<16x8xbf16>
    %1 = arith.extf %0 : vector<16x8xbf16> to vector<16x8xf32>
    %c0_1 = arith.constant 0 : index
    %c0_2 = arith.constant 0 : index
    %2 = vector.load %arg3[%c0_1, %c0_2] : memref<8x16xbf16, #tpu.memory_space<vmem>>, vector<8x16xbf16>
    %3 = arith.extf %2 : vector<8x16xbf16> to vector<8x16xf32>
    %c0_3 = arith.constant 0 : index
    %c0_4 = arith.constant 0 : index
    %4 = vector.load %arg1[%c0_3, %c0_4] : memref<16x128xf32, #tpu.memory_space<vmem>>, vector<16x128xf32>
    %c0_5 = arith.constant 0 : index
    %c0_6 = arith.constant 0 : index
    %5 = vector.load %arg7[%c0_5, %c0_6] : memref<128x128xf32, #tpu.memory_space<vmem>>, vector<128x128xf32>
    %c0_7 = arith.constant 0 : index
    %c0_8 = arith.constant 0 : index
    %6 = vector.load %arg4[%c0_7, %c0_8] : memref<8x1xf32, #tpu.memory_space<vmem>>, vector<8x1xf32>
    %c0_9 = arith.constant 0 : index
    %c0_10 = arith.constant 0 : index
    %7 = vector.load %arg0[%c0_9, %c0_10] : memref<8x128xf32, #tpu.memory_space<vmem>>, vector<8x128xf32>
    %c0_i32 = arith.constant 0 : i32
    %8 = arith.index_cast %c0_i32 : i32 to index
    %c0_11 = arith.constant 0 : index
    %c0_12 = arith.constant 0 : index
    %9 = vector.load %arg5[%8, %c0_11, %c0_12] : memref<2x128x128xf32, #tpu.memory_space<vmem>>, vector<1x128x128xf32>
    %10 = vector.shape_cast %9 : vector<1x128x128xf32> to vector<128x128xf32>
    %cst = arith.constant dense<0.000000e+00> : vector<8x128xf32>
    %11 = tpu.matmul %7, %10, %cst {dimension_numbers = #tpu.dot_dimension_numbers<[1], [0], [0], [1], [0, 0, 1, 1], [], []>} : vector<8x128xf32>, vector<128x128xf32>, vector<8x128xf32> -> vector<8x128xf32>
    %cst_13 = arith.constant dense<0.000000e+00> : vector<16x128xf32>
    %12 = tpu.matmul %1, %11, %cst_13 {dimension_numbers = #tpu.dot_dimension_numbers<[1], [0], [0], [1], [0, 0, 1, 1], [], []>} : vector<16x8xf32>, vector<8x128xf32>, vector<16x128xf32> -> vector<16x128xf32>
    %13 = arith.mulf %4, %12 : vector<16x128xf32>
    %cst_14 = arith.constant dense<0.000000e+00> : vector<8x128xf32>
    %14 = tpu.matmul %3, %13, %cst_14 {dimension_numbers = #tpu.dot_dimension_numbers<[1], [0], [0], [1], [0, 0, 1, 1], [], []>} : vector<8x16xf32>, vector<16x128xf32>, vector<8x128xf32> -> vector<8x128xf32>
    %cst_15 = arith.constant dense<0.000000e+00> : vector<8x128xf32>
    %15 = tpu.matmul %14, %5, %cst_15 {dimension_numbers = #tpu.dot_dimension_numbers<[1], [0], [0], [1], [0, 0, 1, 1], [], []>} : vector<8x128xf32>, vector<128x128xf32>, vector<8x128xf32> -> vector<8x128xf32>
    %16 = arith.index_cast %c0_i32 : i32 to index
    %c0_16 = arith.constant 0 : index
    %c0_17 = arith.constant 0 : index
    %17 = vector.load %arg6[%16, %c0_16, %c0_17] : memref<2x1x128xf32, #tpu.memory_space<vmem>>, vector<1x1x128xf32>
    %18 = vector.shape_cast %17 : vector<1x1x128xf32> to vector<1x128xf32>
    %19 = vector.broadcast %6 : vector<8x1xf32> to vector<8x128xf32>
    %20 = vector.broadcast %18 : vector<1x128xf32> to vector<8x128xf32>
    %21 = arith.mulf %19, %20 : vector<8x128xf32>
    %22 = arith.addf %15, %21 : vector<8x128xf32>
    %cst_18 = arith.constant 0.000000e+00 : f32
    %23 = vector.broadcast %cst_18 : f32 to vector<8x128xf32>
    %24 = arith.maximumf %22, %23 : vector<8x128xf32>
    %c1_i32 = arith.constant 1 : i32
    %25 = arith.index_cast %c1_i32 : i32 to index
    %c0_19 = arith.constant 0 : index
    %c0_20 = arith.constant 0 : index
    %26 = vector.load %arg5[%25, %c0_19, %c0_20] : memref<2x128x128xf32, #tpu.memory_space<vmem>>, vector<1x128x128xf32>
    %27 = vector.shape_cast %26 : vector<1x128x128xf32> to vector<128x128xf32>
    %cst_21 = arith.constant dense<0.000000e+00> : vector<8x128xf32>
    %28 = tpu.matmul %24, %27, %cst_21 {dimension_numbers = #tpu.dot_dimension_numbers<[1], [0], [0], [1], [0, 0, 1, 1], [], []>} : vector<8x128xf32>, vector<128x128xf32>, vector<8x128xf32> -> vector<8x128xf32>
    %cst_22 = arith.constant dense<0.000000e+00> : vector<16x128xf32>
    %29 = tpu.matmul %1, %28, %cst_22 {dimension_numbers = #tpu.dot_dimension_numbers<[1], [0], [0], [1], [0, 0, 1, 1], [], []>} : vector<16x8xf32>, vector<8x128xf32>, vector<16x128xf32> -> vector<16x128xf32>
    %30 = arith.mulf %4, %29 : vector<16x128xf32>
    %cst_23 = arith.constant dense<0.000000e+00> : vector<8x128xf32>
    %31 = tpu.matmul %3, %30, %cst_23 {dimension_numbers = #tpu.dot_dimension_numbers<[1], [0], [0], [1], [0, 0, 1, 1], [], []>} : vector<8x16xf32>, vector<16x128xf32>, vector<8x128xf32> -> vector<8x128xf32>
    %cst_24 = arith.constant dense<0.000000e+00> : vector<8x128xf32>
    %32 = tpu.matmul %31, %5, %cst_24 {dimension_numbers = #tpu.dot_dimension_numbers<[1], [0], [0], [1], [0, 0, 1, 1], [], []>} : vector<8x128xf32>, vector<128x128xf32>, vector<8x128xf32> -> vector<8x128xf32>
    %33 = arith.index_cast %c1_i32 : i32 to index
    %c0_25 = arith.constant 0 : index
    %c0_26 = arith.constant 0 : index
    %34 = vector.load %arg6[%33, %c0_25, %c0_26] : memref<2x1x128xf32, #tpu.memory_space<vmem>>, vector<1x1x128xf32>
    %35 = vector.shape_cast %34 : vector<1x1x128xf32> to vector<1x128xf32>
    %36 = vector.broadcast %6 : vector<8x1xf32> to vector<8x128xf32>
    %37 = vector.broadcast %35 : vector<1x128xf32> to vector<8x128xf32>
    %38 = arith.mulf %36, %37 : vector<8x128xf32>
    %39 = arith.addf %32, %38 : vector<8x128xf32>
    %cst_27 = arith.constant 0.000000e+00 : f32
    %40 = vector.broadcast %cst_27 : f32 to vector<8x128xf32>
    %41 = arith.maximumf %39, %40 : vector<8x128xf32>
    %c2_i32 = arith.constant 2 : i32
    %c0_28 = arith.constant 0 : index
    %c0_29 = arith.constant 0 : index
    %42 = vector.load %arg8[%c0_28, %c0_29] : memref<128x128xf32, #tpu.memory_space<vmem>>, vector<128x128xf32>
    %cst_30 = arith.constant dense<0.000000e+00> : vector<8x128xf32>
    %43 = tpu.matmul %41, %42, %cst_30 {dimension_numbers = #tpu.dot_dimension_numbers<[1], [0], [0], [1], [0, 0, 1, 1], [], []>} : vector<8x128xf32>, vector<128x128xf32>, vector<8x128xf32> -> vector<8x128xf32>
    %c0_31 = arith.constant 0 : index
    %c0_32 = arith.constant 0 : index
    %44 = vector.load %arg9[%c0_31, %c0_32] : memref<1x128xf32, #tpu.memory_space<vmem>>, vector<1x128xf32>
    %45 = vector.broadcast %44 : vector<1x128xf32> to vector<8x128xf32>
    %46 = arith.addf %43, %45 : vector<8x128xf32>
    %c0_33 = arith.constant 0 : index
    %c0_34 = arith.constant 0 : index
    %47 = vector.load %arg10[%c0_33, %c0_34] : memref<8x128xf32, #tpu.memory_space<vmem>>, vector<8x128xf32>
    tpu.vector_store %arg10[%c0_33, %c0_34], %46 {strides = array<i32>} : memref<8x128xf32, #tpu.memory_space<vmem>>, vector<8x128xf32>,
    return
  }
}

</mosaic_0001>

<llo_original>
// kernel: tpu_custom_call.1
$region0: #{tpu_custom_call.1}
  #allocation0 [shape = 'u32[]', space=smem, size = 0x4, offset = 0x4, fixed_abs, tag = 'smem constant byte address 0x4 - core index']
  #allocation1 [shape = 'u32[144,128]{1,0:T(1,128)}', space=vmem, size = 0x12000, scoped, tag = 'internal scratch']
  %s0 = inlined_call_operand.vmem [shape: f32[8,128], index: 0, kind: input, shape index: {}]
  %s1 = inlined_call_operand.vmem [shape: f32[16,128], index: 1, kind: input, shape index: {}]
  %s2 = inlined_call_operand.vmem [shape: bf16[16,8], index: 2, kind: input, shape index: {}]
  %s3 = inlined_call_operand.vmem [shape: bf16[8,16], index: 3, kind: input, shape index: {}]
  %s4 = inlined_call_operand.vmem [shape: f32[8,1], index: 4, kind: input, shape index: {}]
  %s5 = inlined_call_operand.hbm [shape: f32[2,128,128], index: 5, kind: input, shape index: {}]
  %s6 = inlined_call_operand.vmem [shape: f32[2,1,128], index: 6, kind: input, shape index: {}]
  %s7 = inlined_call_operand.hbm [shape: f32[128,128], index: 7, kind: input, shape index: {}]
  %s8 = inlined_call_operand.hbm [shape: f32[128,128], index: 8, kind: input, shape index: {}]
  %s9 = inlined_call_operand.vmem [shape: f32[1,128], index: 9, kind: input, shape index: {}]
  %s10 = inlined_call_operand.hbm [shape: f32[8,128], index: 10, kind: output, shape index: {}]
  %s11 = sld [smem:[#allocation0]]
  $region62: #{tpu_custom_call.1} parent=0
    _
  %s13 = ssub.s32 1, %s11
  %s14 = scalar_select 0, %s13, %s11
  $region1: #{tpu_custom_call.1} parent=0
    #allocation2 [shape = 'u8[131072]{0}', space=vmem, size = 0x20000, scoped, tag = 'input window, operand 5, single buffered']
    #allocation3 [shape = 's32[1]{0}', space=sflag, size = 0x4, scoped, tag = 'scoped memory for tpu_custom_call.1']
    #allocation4 [shape = 's32[1]{0}', space=sflag, size = 0x4, scoped, tag = 'scoped memory for tpu_custom_call.1']
    #allocation5 [shape = 'u8[65536]{0}', space=vmem, size = 0x10000, scoped, tag = 'input window, operand 7, single buffered']
    #allocation6 [shape = 's32[1]{0}', space=sflag, size = 0x4, scoped, tag = 'scoped memory for tpu_custom_call.1']
    #allocation7 [shape = 'u8[65536]{0}', space=vmem, size = 0x10000, scoped, tag = 'input window, operand 8, single buffered']
    #allocation8 [shape = 'u8[4096]{0}', space=vmem, size = 0x1000, scoped, tag = 'output window, operand 0, single buffered']
    %15 = vsyncpa [#allocation3], 0
    %16 = vsyncpa [#allocation6], 0
    %17 = vsyncpa [#allocation4], 0
    // Predicated region
    $region2: #{tpu_custom_call.1} parent=1 // pred_check
      _
    $region3: #{tpu_custom_call.1} parent=1 // pred_check_branch
      %19 = sbr.rel (0) target = $region5
    $region4: #{tpu_custom_call.1} parent=1 // pred_region
      _
    $region5: #{tpu_custom_call.1} parent=1 // pred_fallthru
      _
    // Predicated region
    $region6: #{tpu_custom_call.1} parent=1 // pred_check
      _
    $region7: #{tpu_custom_call.1} parent=1 // pred_check_branch
      %21 = sbr.rel (0) target = $region9
    $region8: #{tpu_custom_call.1} parent=1 // pred_region
      _
    $region9: #{tpu_custom_call.1} parent=1 // pred_fallthru
      _
    // Predicated region
    $region10: #{tpu_custom_call.1} parent=1 // pred_check
      _
    $region11: #{tpu_custom_call.1} parent=1 // pred_check_branch
      %23 = sbr.rel (0) target = $region13
    $region12: #{tpu_custom_call.1} parent=1 // pred_region
      _
    $region13: #{tpu_custom_call.1} parent=1 // pred_fallthru
      _
    // Predicated region
    $region14: #{tpu_custom_call.1} parent=1 // pred_check
      _
    $region15: #{tpu_custom_call.1} parent=1 // pred_check_branch
      %25 = sbr.rel (0) target = $region17
    $region16: #{tpu_custom_call.1} parent=1 // pred_region
      _
    $region17: #{tpu_custom_call.1} parent=1 // pred_fallthru
      _
    // Predicated region
    $region18: #{tpu_custom_call.1} parent=1 // pred_check
      _
    $region19: #{tpu_custom_call.1} parent=1 // pred_check_branch
      %27 = sbr.rel (0) target = $region21
    $region20: #{tpu_custom_call.1} parent=1 // pred_region
      _
    $region21: #{tpu_custom_call.1} parent=1 // pred_fallthru
      _
    // Predicated region
    $region22: #{tpu_custom_call.1} parent=1 // pred_check
      _
    $region23: #{tpu_custom_call.1} parent=1 // pred_check_branch
      %29 = sbr.rel (0) target = $region25
    $region24: #{tpu_custom_call.1} parent=1 // pred_region
      %s31 = ssub.s32 4096, 4096
      %32 = vsyncadd [#allocation3], %s31
      %s33 = sshll.u32 [#allocation2], 4
      %s34 = int_to_ptr.vmem [resolvable:$true] %s33
      %39 = dma.hbm_to_vmem [thread:$0]  %s5, 4096, %s34, [#allocation3], 128, 128, 8
    $region25: #{tpu_custom_call.1} parent=1 // pred_fallthru
      _
    // Predicated region
    $region26: #{tpu_custom_call.1} parent=1 // pred_check
      _
    $region27: #{tpu_custom_call.1} parent=1 // pred_check_branch
      %41 = sbr.rel (0) target = $region29
    $region28: #{tpu_custom_call.1} parent=1 // pred_region
      _
    $region29: #{tpu_custom_call.1} parent=1 // pred_fallthru
      _
    // Predicated region
    $region30: #{tpu_custom_call.1} parent=1 // pred_check
      _
    $region31: #{tpu_custom_call.1} parent=1 // pred_check_branch
      %43 = sbr.rel (0) target = $region33
    $region32: #{tpu_custom_call.1} parent=1 // pred_region
      %s45 = ssub.s32 2048, 2048
      %46 = vsyncadd [#allocation6], %s45
      %s47 = sshll.u32 [#allocation5], 4
      %s48 = int_to_ptr.vmem [resolvable:$true] %s47
      %53 = dma.hbm_to_vmem [thread:$0]  %s7, 2048, %s48, [#allocation6], 128, 128, 8
    $region33: #{tpu_custom_call.1} parent=1 // pred_fallthru
      _
    // Predicated region
    $region34: #{tpu_custom_call.1} parent=1 // pred_check
      _
    $region35: #{tpu_custom_call.1} parent=1 // pred_check_branch
      %55 = sbr.rel (0) target = $region37
    $region36: #{tpu_custom_call.1} parent=1 // pred_region
      %s57 = ssub.s32 2048, 2048
      %58 = vsyncadd [#allocation6], %s57
      %s59 = sshll.u32 [#allocation7], 4
      %s60 = int_to_ptr.vmem [resolvable:$true] %s59
      %65 = dma.hbm_to_vmem [thread:$0]  %s8, 2048, %s60, [#allocation6], 128, 128, 8
    $region37: #{tpu_custom_call.1} parent=1 // pred_fallthru
      _
    // Predicated region
    $region38: #{tpu_custom_call.1} parent=1 // pred_check
      _
    $region39: #{tpu_custom_call.1} parent=1 // pred_check_branch
      %67 = sbr.rel (0) target = $region41
    $region40: #{tpu_custom_call.1} parent=1 // pred_region
      _
    $region41: #{tpu_custom_call.1} parent=1 // pred_fallthru
      _
    // Predicated region
    $region42: #{tpu_custom_call.1} parent=1 // pred_check
      _
    $region43: #{tpu_custom_call.1} parent=1 // pred_check_branch
      %69 = sbr.rel (0) target = $region45
    $region44: #{tpu_custom_call.1} parent=1 // pred_region
      %70 = dma.done [#allocation3], 4096
    $region45: #{tpu_custom_call.1} parent=1 // pred_fallthru
      _
    // Predicated region
    $region46: #{tpu_custom_call.1} parent=1 // pred_check
      _
    $region47: #{tpu_custom_call.1} parent=1 // pred_check_branch
      %72 = sbr.rel (0) target = $region49
    $region48: #{tpu_custom_call.1} parent=1 // pred_region
      %73 = dma.done [#allocation6], 2048
    $region49: #{tpu_custom_call.1} parent=1 // pred_fallthru
      _
    // Predicated region
    $region50: #{tpu_custom_call.1} parent=1 // pred_check
      _
    $region51: #{tpu_custom_call.1} parent=1 // pred_check_branch
      %75 = sbr.rel (0) target = $region53
    $region52: #{tpu_custom_call.1} parent=1 // pred_region
      %76 = dma.done [#allocation6], 2048
    $region53: #{tpu_custom_call.1} parent=1 // pred_fallthru
      _
    %v77 = vld [vmem:[%s2] sm:$0xf]
    %v78 = vld [vmem:[%s2 + $0x4] sm:$0xf]
    %v79 = vunpack.c.l.bf16 %v77
    %v80 = vunpack.c.l.bf16 %v78
    %v81 = vld [vmem:[%s3] sm:$0xf]
    %v82 = vunpack.c.l.bf16 %v81
    %v83 = vld [vmem:[%s1] sm:$0xff]
    %v84 = vld [vmem:[%s1 + $0x8] sm:$0xff]
    %v85 = vld [vmem:[#allocation5] sm:$0xff]
    %v86 = vld [vmem:[#allocation5 + $0x8] sm:$0xff]
    %v87 = vld [vmem:[#allocation5 + $0x10] sm:$0xff]
    %v88 = vld [vmem:[#allocation5 + $0x18] sm:$0xff]
    %v89 = vld [vmem:[#allocation5 + $0x20] sm:$0xff]
    %v90 = vld [vmem:[#allocation5 + $0x28] sm:$0xff]
    %v91 = vld [vmem:[#allocation5 + $0x30] sm:$0xff]
    %v92 = vld [vmem:[#allocation5 + $0x38] sm:$0xff]
    %v93 = vld [vmem:[#allocation5 + $0x40] sm:$0xff]
    %v94 = vld [vmem:[#allocation5 + $0x48] sm:$0xff]
    %v95 = vld [vmem:[#allocation5 + $0x50] sm:$0xff]
    %v96 = vld [vmem:[#allocation5 + $0x58] sm:$0xff]
    %v97 = vld [vmem:[#allocation5 + $0x60] sm:$0xff]
    %v98 = vld [vmem:[#allocation5 + $0x68] sm:$0xff]
    %v99 = vld [vmem:[#allocation5 + $0x70] sm:$0xff]
    %v100 = vld [vmem:[#allocation5 + $0x78] sm:$0xff]
    %v101 = vld [vmem:[%s4] sm:$0xff]
    %v102 = vld [vmem:[%s0] sm:$0xff]
    %v103 = vld [vmem:[#allocation2] sm:$0xff]
    %v104 = vld [vmem:[#allocation2 + $0x8] sm:$0xff]
    %v105 = vld [vmem:[#allocation2 + $0x10] sm:$0xff]
    %v106 = vld [vmem:[#allocation2 + $0x18] sm:$0xff]
    %v107 = vld [vmem:[#allocation2 + $0x20] sm:$0xff]
    %v108 = vld [vmem:[#allocation2 + $0x28] sm:$0xff]
    %v109 = vld [vmem:[#allocation2 + $0x30] sm:$0xff]
    %v110 = vld [vmem:[#allocation2 + $0x38] sm:$0xff]
    %v111 = vld [vmem:[#allocation2 + $0x40] sm:$0xff]
    %v112 = vld [vmem:[#allocation2 + $0x48] sm:$0xff]
    %v113 = vld [vmem:[#allocation2 + $0x50] sm:$0xff]
    %v114 = vld [vmem:[#allocation2 + $0x58] sm:$0xff]
    %v115 = vld [vmem:[#allocation2 + $0x60] sm:$0xff]
    %v116 = vld [vmem:[#allocation2 + $0x68] sm:$0xff]
    %v117 = vld [vmem:[#allocation2 + $0x70] sm:$0xff]
    %v118 = vld [vmem:[#allocation2 + $0x78] sm:$0xff]
    %119 = vmatprep.subr.mxu0 0.0
    %120 = vmatpush1.msra.mxu0 %v103
    %121 = vmatprep.subr.mxu0 0.0
    %122 = vmatpush1.msra.mxu0 %v104
    %123 = vmatprep.subr.mxu0 0.0
    %124 = vmatpush1.msra.mxu0 %v105
    %125 = vmatprep.subr.mxu0 0.0
    %126 = vmatpush1.msra.mxu0 %v106
    %127 = vmatprep.subr.mxu0 0.0
    %128 = vmatpush1.msra.mxu0 %v107
    %129 = vmatprep.subr.mxu0 0.0
    %130 = vmatpush1.msra.mxu0 %v108
    %131 = vmatprep.subr.mxu0 0.0
    %132 = vmatpush1.msra.mxu0 %v109
    %133 = vmatprep.subr.mxu0 0.0
    %134 = vmatpush1.msra.mxu0 %v110
    %135 = vmatprep.subr.mxu0 0.0
    %136 = vmatpush1.msra.mxu0 %v111
    %137 = vmatprep.subr.mxu0 0.0
    %138 = vmatpush1.msra.mxu0 %v112
    %139 = vmatprep.subr.mxu0 0.0
    %140 = vmatpush1.msra.mxu0 %v113
    %141 = vmatprep.subr.mxu0 0.0
    %142 = vmatpush1.msra.mxu0 %v114
    %143 = vmatprep.subr.mxu0 0.0
    %144 = vmatpush1.msra.mxu0 %v115
    %145 = vmatprep.subr.mxu0 0.0
    %146 = vmatpush1.msra.mxu0 %v116
    %147 = vmatprep.subr.mxu0 0.0
    %148 = vmatpush1.msra.mxu0 %v117
    %149 = vmatprep.subr.mxu0 0.0
    %150 = vmatpush1.msra.mxu0 %v118
    %151 = vmatprep.subr.mxu0 0.0
    %152 = vmatpush1.msra.mxu0 0.0
    %153 = vmatprep.subr.mxu0 0.0
    %154 = vmatpush1.msra.mxu0 0.0
    %155 = vmatprep.subr.mxu0 0.0
    %156 = vmatpush1.msra.mxu0 0.0
    %157 = vmatprep.subr.mxu0 0.0
    %158 = vmatpush1.msra.mxu0 0.0
    %159 = vmatprep.subr.mxu0 0.0
    %160 = vmatpush1.msra.mxu0 0.0
    %161 = vmatprep.subr.mxu0 0.0
    %162 = vmatpush1.msra.mxu0 0.0
    %163 = vmatprep.subr.mxu0 0.0
    %164 = vmatpush1.msra.mxu0 0.0
    %165 = vmatprep.subr.mxu0 0.0
    %166 = vmatpush1.msra.mxu0 0.0
    %167 = vmatprep.subr.mxu0 0.0
    %168 = vmatpush1.msra.mxu0 0.0
    %169 = vmatprep.subr.mxu0 0.0
    %170 = vmatpush1.msra.mxu0 0.0
    %171 = vmatprep.subr.mxu0 0.0
    %172 = vmatpush1.msra.mxu0 0.0
    %173 = vmatprep.subr.mxu0 0.0
    %174 = vmatpush1.msra.mxu0 0.0
    %175 = vmatprep.subr.mxu0 0.0
    %176 = vmatpush1.msra.mxu0 0.0
    %177 = vmatprep.subr.mxu0 0.0
    %178 = vmatpush1.msra.mxu0 0.0
    %179 = vmatprep.subr.mxu0 0.0
    %180 = vmatpush1.msra.mxu0 0.0
    %181 = vmatprep.subr.mxu0 0.0
    %182 = vmatpush1.msra.mxu0 0.0
    %183 = vmatprep.mubr.f32.mxu0 0.0
    %184 = vmatmul.mubr.f32.gmra.mrb[0].mxu0 %v102
    %v185 = vpop.f32.mrb[0].mxu0
    %v186 = vadd.f32 0.0, %v185
    %v187 = vpop.f32.mrb[0].mxu0
    %188 = vdwg.mxu0
    %vm189 = vcmask 64512
    %v191 = vsel %vm189, %v79, 0
    %v194 = vsel %vm189, %v80, 0
    %196 = vmatprep.subr.mxu0 0.0
    %197 = vmatpush1.msra.mxu0 %v186
    %198 = vmatprep.subr.mxu0 0.0
    %199 = vmatpush1.msra.mxu0 0.0
    %200 = vmatprep.subr.mxu0 0.0
    %201 = vmatpush1.msra.mxu0 0.0
    %202 = vmatprep.subr.mxu0 0.0
    %203 = vmatpush1.msra.mxu0 0.0
    %204 = vmatprep.subr.mxu0 0.0
    %205 = vmatpush1.msra.mxu0 0.0
    %206 = vmatprep.subr.mxu0 0.0
    %207 = vmatpush1.msra.mxu0 0.0
    %208 = vmatprep.subr.mxu0 0.0
    %209 = vmatpush1.msra.mxu0 0.0
    %210 = vmatprep.subr.mxu0 0.0
    %211 = vmatpush1.msra.mxu0 0.0
    %212 = vmatprep.subr.mxu0 0.0
    %213 = vmatpush1.msra.mxu0 0.0
    %214 = vmatprep.subr.mxu0 0.0
    %215 = vmatpush1.msra.mxu0 0.0
    %216 = vmatprep.subr.mxu0 0.0
    %217 = vmatpush1.msra.mxu0 0.0
    %218 = vmatprep.subr.mxu0 0.0
    %219 = vmatpush1.msra.mxu0 0.0
    %220 = vmatprep.subr.mxu0 0.0
    %221 = vmatpush1.msra.mxu0 0.0
    %222 = vmatprep.subr.mxu0 0.0
    %223 = vmatpush1.msra.mxu0 0.0
    %224 = vmatprep.subr.mxu0 0.0
    %225 = vmatpush1.msra.mxu0 0.0
    %226 = vmatprep.subr.mxu0 0.0
    %227 = vmatpush1.msra.mxu0 0.0
    %228 = vmatprep.subr.mxu0 0.0
    %229 = vmatpush1.msra.mxu0 0.0
    %230 = vmatprep.subr.mxu0 0.0
    %231 = vmatpush1.msra.mxu0 0.0
    %232 = vmatprep.subr.mxu0 0.0
    %233 = vmatpush1.msra.mxu0 0.0
    %234 = vmatprep.subr.mxu0 0.0
    %235 = vmatpush1.msra.mxu0 0.0
    %236 = vmatprep.subr.mxu0 0.0
    %237 = vmatpush1.msra.mxu0 0.0
    %238 = vmatprep.subr.mxu0 0.0
    %239 = vmatpush1.msra.mxu0 0.0
    %240 = vmatprep.subr.mxu0 0.0
    %241 = vmatpush1.msra.mxu0 0.0
    %242 = vmatprep.subr.mxu0 0.0
    %243 = vmatpush1.msra.mxu0 0.0
    %244 = vmatprep.subr.mxu0 0.0
    %245 = vmatpush1.msra.mxu0 0.0
    %246 = vmatprep.subr.mxu0 0.0
    %247 = vmatpush1.msra.mxu0 0.0
    %248 = vmatprep.subr.mxu0 0.0
    %249 = vmatpush1.msra.mxu0 0.0
    %250 = vmatprep.subr.mxu0 0.0
    %251 = vmatpush1.msra.mxu0 0.0
    %252 = vmatprep.subr.mxu0 0.0
    %253 = vmatpush1.msra.mxu0 0.0
    %254 = vmatprep.subr.mxu0 0.0
    %255 = vmatpush1.msra.mxu0 0.0
    %256 = vmatprep.subr.mxu0 0.0
    %257 = vmatpush1.msra.mxu0 0.0
    %258 = vmatprep.subr.mxu0 0.0
    %259 = vmatpush1.msra.mxu0 0.0
    %260 = vmatprep.mubr.f32.mxu0 0.0
    %261 = vmatmul.mubr.f32.gmra.mrb[0].mxu0 %v191
    %v262 = vpop.f32.mrb[0].mxu0
    %v263 = vadd.f32 0.0, %v262
    %v264 = vpop.f32.mrb[0].mxu0
    %265 = vmatprep.mubr.f32.mxu0 0.0
    %266 = vmatmul.mubr.f32.gmra.mrb[0].mxu0 %v194
    %v267 = vpop.f32.mrb[0].mxu0
    %v268 = vadd.f32 0.0, %v267
    %v269 = vpop.f32.mrb[0].mxu0
    %270 = vdwg.mxu0
    %v271 = vmul.f32 %v83, %v263
    %v272 = vmul.f32 %v84, %v268
    %vm273 = vcmask 130048
    %v275 = vsel %vm273, %v82, 0
    %277 = vmatprep.subr.mxu0 0.0
    %278 = vmatpush1.msra.mxu0 %v271
    %279 = vmatprep.subr.mxu0 0.0
    %280 = vmatpush1.msra.mxu0 %v272
    %281 = vmatprep.subr.mxu0 0.0
    %282 = vmatpush1.msra.mxu0 0.0
    %283 = vmatprep.subr.mxu0 0.0
    %284 = vmatpush1.msra.mxu0 0.0
    %285 = vmatprep.subr.mxu0 0.0
    %286 = vmatpush1.msra.mxu0 0.0
    %287 = vmatprep.subr.mxu0 0.0
    %288 = vmatpush1.msra.mxu0 0.0
    %289 = vmatprep.subr.mxu0 0.0
    %290 = vmatpush1.msra.mxu0 0.0
    %291 = vmatprep.subr.mxu0 0.0
    %292 = vmatpush1.msra.mxu0 0.0
    %293 = vmatprep.subr.mxu0 0.0
    %294 = vmatpush1.msra.mxu0 0.0
    %295 = vmatprep.subr.mxu0 0.0
    %296 = vmatpush1.msra.mxu0 0.0
    %297 = vmatprep.subr.mxu0 0.0
    %298 = vmatpush1.msra.mxu0 0.0
    %299 = vmatprep.subr.mxu0 0.0
    %300 = vmatpush1.msra.mxu0 0.0
    %301 = vmatprep.subr.mxu0 0.0
    %302 = vmatpush1.msra.mxu0 0.0
    %303 = vmatprep.subr.mxu0 0.0
    %304 = vmatpush1.msra.mxu0 0.0
    %305 = vmatprep.subr.mxu0 0.0
    %306 = vmatpush1.msra.mxu0 0.0
    %307 = vmatprep.subr.mxu0 0.0
    %308 = vmatpush1.msra.mxu0 0.0
    %309 = vmatprep.subr.mxu0 0.0
    %310 = vmatpush1.msra.mxu0 0.0
    %311 = vmatprep.subr.mxu0 0.0
    %312 = vmatpush1.msra.mxu0 0.0
    %313 = vmatprep.subr.mxu0 0.0
    %314 = vmatpush1.msra.mxu0 0.0
    %315 = vmatprep.subr.mxu0 0.0
    %316 = vmatpush1.msra.mxu0 0.0
    %317 = vmatprep.subr.mxu0 0.0
    %318 = vmatpush1.msra.mxu0 0.0
    %319 = vmatprep.subr.mxu0 0.0
    %320 = vmatpush1.msra.mxu0 0.0
    %321 = vmatprep.subr.mxu0 0.0
    %322 = vmatpush1.msra.mxu0 0.0
    %323 = vmatprep.subr.mxu0 0.0
    %324 = vmatpush1.msra.mxu0 0.0
    %325 = vmatprep.subr.mxu0 0.0
    %326 = vmatpush1.msra.mxu0 0.0
    %327 = vmatprep.subr.mxu0 0.0
    %328 = vmatpush1.msra.mxu0 0.0
    %329 = vmatprep.subr.mxu0 0.0
    %330 = vmatpush1.msra.mxu0 0.0
    %331 = vmatprep.subr.mxu0 0.0
    %332 = vmatpush1.msra.mxu0 0.0
    %333 = vmatprep.subr.mxu0 0.0
    %334 = vmatpush1.msra.mxu0 0.0
    %335 = vmatprep.subr.mxu0 0.0
    %336 = vmatpush1.msra.mxu0 0.0
    %337 = vmatprep.subr.mxu0 0.0
    %338 = vmatpush1.msra.mxu0 0.0
    %339 = vmatprep.subr.mxu0 0.0
    %340 = vmatpush1.msra.mxu0 0.0
    %341 = vmatprep.mubr.f32.mxu0 0.0
    %342 = vmatmul.mubr.f32.gmra.mrb[0].mxu0 %v275
    %v343 = vpop.f32.mrb[0].mxu0
    %v344 = vadd.f32 0.0, %v343
    %v345 = vpop.f32.mrb[0].mxu0
    %346 = vdwg.mxu0
    %v347 = vld [vmem:[%s6] sm:$0x1]
    %349 = vset.pattern.permute.xlu0 0
    %350 = vperm.xlu0 %349, %v101
    %v351 = vpop.permute.xlu0 %350
    %v354 = vlaneseq
    %v355 = vshrl.u32 %v354, 7
    %v356 = vsub.s32 0, %v355
    %v357 = vrot.slane %v347, %v356
    %v359 = vmul.f32 %v351, %v357
    %360 = vmatprep.subr.mxu0 0.0
    %361 = vmatpush1.msra.mxu0 %v85
    %362 = vmatprep.subr.mxu0 0.0
    %363 = vmatpush1.msra.mxu0 %v86
    %364 = vmatprep.subr.mxu0 0.0
    %365 = vmatpush1.msra.mxu0 %v87
    %366 = vmatprep.subr.mxu0 0.0
    %367 = vmatpush1.msra.mxu0 %v88
    %368 = vmatprep.subr.mxu0 0.0
    %369 = vmatpush1.msra.mxu0 %v89
    %370 = vmatprep.subr.mxu0 0.0
    %371 = vmatpush1.msra.mxu0 %v90
    %372 = vmatprep.subr.mxu0 0.0
    %373 = vmatpush1.msra.mxu0 %v91
    %374 = vmatprep.subr.mxu0 0.0
    %375 = vmatpush1.msra.mxu0 %v92
    %376 = vmatprep.subr.mxu0 0.0
    %377 = vmatpush1.msra.mxu0 %v93
    %378 = vmatprep.subr.mxu0 0.0
    %379 = vmatpush1.msra.mxu0 %v94
    %380 = vmatprep.subr.mxu0 0.0
    %381 = vmatpush1.msra.mxu0 %v95
    %382 = vmatprep.subr.mxu0 0.0
    %383 = vmatpush1.msra.mxu0 %v96
    %384 = vmatprep.subr.mxu0 0.0
    %385 = vmatpush1.msra.mxu0 %v97
    %386 = vmatprep.subr.mxu0 0.0
    %387 = vmatpush1.msra.mxu0 %v98
    %388 = vmatprep.subr.mxu0 0.0
    %389 = vmatpush1.msra.mxu0 %v99
    %390 = vmatprep.subr.mxu0 0.0
    %391 = vmatpush1.msra.mxu0 %v100
    %392 = vmatprep.subr.mxu0 0.0
    %393 = vmatpush1.msra.mxu0 0.0
    %394 = vmatprep.subr.mxu0 0.0
    %395 = vmatpush1.msra.mxu0 0.0
    %396 = vmatprep.subr.mxu0 0.0
    %397 = vmatpush1.msra.mxu0 0.0
    %398 = vmatprep.subr.mxu0 0.0
    %399 = vmatpush1.msra.mxu0 0.0
    %400 = vmatprep.subr.mxu0 0.0
    %401 = vmatpush1.msra.mxu0 0.0
    %402 = vmatprep.subr.mxu0 0.0
    %403 = vmatpush1.msra.mxu0 0.0
    %404 = vmatprep.subr.mxu0 0.0
    %405 = vmatpush1.msra.mxu0 0.0
    %406 = vmatprep.subr.mxu0 0.0
    %407 = vmatpush1.msra.mxu0 0.0
    %408 = vmatprep.subr.mxu0 0.0
    %409 = vmatpush1.msra.mxu0 0.0
    %410 = vmatprep.subr.mxu0 0.0
    %411 = vmatpush1.msra.mxu0 0.0
    %412 = vmatprep.subr.mxu0 0.0
    %413 = vmatpush1.msra.mxu0 0.0
    %414 = vmatprep.subr.mxu0 0.0
    %415 = vmatpush1.msra.mxu0 0.0
    %416 = vmatprep.subr.mxu0 0.0
    %417 = vmatpush1.msra.mxu0 0.0
    %418 = vmatprep.subr.mxu0 0.0
    %419 = vmatpush1.msra.mxu0 0.0
    %420 = vmatprep.subr.mxu0 0.0
    %421 = vmatpush1.msra.mxu0 0.0
    %422 = vmatprep.subr.mxu0 0.0
    %423 = vmatpush1.msra.mxu0 0.0
    %424 = vmatprep.mubr.f32.mxu0 0.0
    %425 = vmatmul.mubr.f32.gmra.mrb[0].mxu0 %v344
    %v426 = vpop.f32.mrb[0].mxu0
    %v427 = vadd.f32 %v359, %v426
    %v428 = vpop.f32.mrb[0].mxu0
    %429 = vdwg.mxu0
    %v430 = vmax.f32 %v427, 0.0
    %s431 = scalar_lea.vmem [#allocation2], 128
    %v432 = vld [vmem:[%s431] sm:$0xff]
    %v433 = vld [vmem:[%s431 + $0x8] sm:$0xff]
    %v434 = vld [vmem:[%s431 + $0x10] sm:$0xff]
    %v435 = vld [vmem:[%s431 + $0x18] sm:$0xff]
    %v436 = vld [vmem:[%s431 + $0x20] sm:$0xff]
    %v437 = vld [vmem:[%s431 + $0x28] sm:$0xff]
    %v438 = vld [vmem:[%s431 + $0x30] sm:$0xff]
    %v439 = vld [vmem:[%s431 + $0x38] sm:$0xff]
    %v440 = vld [vmem:[%s431 + $0x40] sm:$0xff]
    %v441 = vld [vmem:[%s431 + $0x48] sm:$0xff]
    %v442 = vld [vmem:[%s431 + $0x50] sm:$0xff]
    %v443 = vld [vmem:[%s431 + $0x58] sm:$0xff]
    %v444 = vld [vmem:[%s431 + $0x60] sm:$0xff]
    %v445 = vld [vmem:[%s431 + $0x68] sm:$0xff]
    %v446 = vld [vmem:[%s431 + $0x70] sm:$0xff]
    %v447 = vld [vmem:[%s431 + $0x78] sm:$0xff]
    %448 = vmatprep.subr.mxu0 0.0
    %449 = vmatpush1.msra.mxu0 %v432
    %450 = vmatprep.subr.mxu0 0.0
    %451 = vmatpush1.msra.mxu0 %v433
    %452 = vmatprep.subr.mxu0 0.0
    %453 = vmatpush1.msra.mxu0 %v434
    %454 = vmatprep.subr.mxu0 0.0
    %455 = vmatpush1.msra.mxu0 %v435
    %456 = vmatprep.subr.mxu0 0.0
    %457 = vmatpush1.msra.mxu0 %v436
    %458 = vmatprep.subr.mxu0 0.0
    %459 = vmatpush1.msra.mxu0 %v437
    %460 = vmatprep.subr.mxu0 0.0
    %461 = vmatpush1.msra.mxu0 %v438
    %462 = vmatprep.subr.mxu0 0.0
    %463 = vmatpush1.msra.mxu0 %v439
    %464 = vmatprep.subr.mxu0 0.0
    %465 = vmatpush1.msra.mxu0 %v440
    %466 = vmatprep.subr.mxu0 0.0
    %467 = vmatpush1.msra.mxu0 %v441
    %468 = vmatprep.subr.mxu0 0.0
    %469 = vmatpush1.msra.mxu0 %v442
    %470 = vmatprep.subr.mxu0 0.0
    %471 = vmatpush1.msra.mxu0 %v443
    %472 = vmatprep.subr.mxu0 0.0
    %473 = vmatpush1.msra.mxu0 %v444
    %474 = vmatprep.subr.mxu0 0.0
    %475 = vmatpush1.msra.mxu0 %v445
    %476 = vmatprep.subr.mxu0 0.0
    %477 = vmatpush1.msra.mxu0 %v446
    %478 = vmatprep.subr.mxu0 0.0
    %479 = vmatpush1.msra.mxu0 %v447
    %480 = vmatprep.subr.mxu0 0.0
    %481 = vmatpush1.msra.mxu0 0.0
    %482 = vmatprep.subr.mxu0 0.0
    %483 = vmatpush1.msra.mxu0 0.0
    %484 = vmatprep.subr.mxu0 0.0
    %485 = vmatpush1.msra.mxu0 0.0
    %486 = vmatprep.subr.mxu0 0.0
    %487 = vmatpush1.msra.mxu0 0.0
    %488 = vmatprep.subr.mxu0 0.0
    %489 = vmatpush1.msra.mxu0 0.0
    %490 = vmatprep.subr.mxu0 0.0
    %491 = vmatpush1.msra.mxu0 0.0
    %492 = vmatprep.subr.mxu0 0.0
    %493 = vmatpush1.msra.mxu0 0.0
    %494 = vmatprep.subr.mxu0 0.0
    %495 = vmatpush1.msra.mxu0 0.0
    %496 = vmatprep.subr.mxu0 0.0
    %497 = vmatpush1.msra.mxu0 0.0
    %498 = vmatprep.subr.mxu0 0.0
    %499 = vmatpush1.msra.mxu0 0.0
    %500 = vmatprep.subr.mxu0 0.0
    %501 = vmatpush1.msra.mxu0 0.0
    %502 = vmatprep.subr.mxu0 0.0
    %503 = vmatpush1.msra.mxu0 0.0
    %504 = vmatprep.subr.mxu0 0.0
    %505 = vmatpush1.msra.mxu0 0.0
    %506 = vmatprep.subr.mxu0 0.0
    %507 = vmatpush1.msra.mxu0 0.0
    %508 = vmatprep.subr.mxu0 0.0
    %509 = vmatpush1.msra.mxu0 0.0
    %510 = vmatprep.subr.mxu0 0.0
    %511 = vmatpush1.msra.mxu0 0.0
    %512 = vmatprep.mubr.f32.mxu0 0.0
    %513 = vmatmul.mubr.f32.gmra.mrb[0].mxu0 %v430
    %v514 = vpop.f32.mrb[0].mxu0
    %v515 = vadd.f32 0.0, %v514
    %v516 = vpop.f32.mrb[0].mxu0
    %517 = vdwg.mxu0
    %518 = vmatprep.subr.mxu0 0.0
    %519 = vmatpush1.msra.mxu0 %v515
    %520 = vmatprep.subr.mxu0 0.0
    %521 = vmatpush1.msra.mxu0 0.0
    %522 = vmatprep.subr.mxu0 0.0
    %523 = vmatpush1.msra.mxu0 0.0
    %524 = vmatprep.subr.mxu0 0.0
    %525 = vmatpush1.msra.mxu0 0.0
    %526 = vmatprep.subr.mxu0 0.0
    %527 = vmatpush1.msra.mxu0 0.0
    %528 = vmatprep.subr.mxu0 0.0
    %529 = vmatpush1.msra.mxu0 0.0
    %530 = vmatprep.subr.mxu0 0.0
    %531 = vmatpush1.msra.mxu0 0.0
    %532 = vmatprep.subr.mxu0 0.0
    %533 = vmatpush1.msra.mxu0 0.0
    %534 = vmatprep.subr.mxu0 0.0
    %535 = vmatpush1.msra.mxu0 0.0
    %536 = vmatprep.subr.mxu0 0.0
    %537 = vmatpush1.msra.mxu0 0.0
    %538 = vmatprep.subr.mxu0 0.0
    %539 = vmatpush1.msra.mxu0 0.0
    %540 = vmatprep.subr.mxu0 0.0
    %541 = vmatpush1.msra.mxu0 0.0
    %542 = vmatprep.subr.mxu0 0.0
    %543 = vmatpush1.msra.mxu0 0.0
    %544 = vmatprep.subr.mxu0 0.0
    %545 = vmatpush1.msra.mxu0 0.0
    %546 = vmatprep.subr.mxu0 0.0
    %547 = vmatpush1.msra.mxu0 0.0
    %548 = vmatprep.subr.mxu0 0.0
    %549 = vmatpush1.msra.mxu0 0.0
    %550 = vmatprep.subr.mxu0 0.0
    %551 = vmatpush1.msra.mxu0 0.0
    %552 = vmatprep.subr.mxu0 0.0
    %553 = vmatpush1.msra.mxu0 0.0
    %554 = vmatprep.subr.mxu0 0.0
    %555 = vmatpush1.msra.mxu0 0.0
    %556 = vmatprep.subr.mxu0 0.0
    %557 = vmatpush1.msra.mxu0 0.0
    %558 = vmatprep.subr.mxu0 0.0
    %559 = vmatpush1.msra.mxu0 0.0
    %560 = vmatprep.subr.mxu0 0.0
    %561 = vmatpush1.msra.mxu0 0.0
    %562 = vmatprep.subr.mxu0 0.0
    %563 = vmatpush1.msra.mxu0 0.0
    %564 = vmatprep.subr.mxu0 0.0
    %565 = vmatpush1.msra.mxu0 0.0
    %566 = vmatprep.subr.mxu0 0.0
    %567 = vmatpush1.msra.mxu0 0.0
    %568 = vmatprep.subr.mxu0 0.0
    %569 = vmatpush1.msra.mxu0 0.0
    %570 = vmatprep.subr.mxu0 0.0
    %571 = vmatpush1.msra.mxu0 0.0
    %572 = vmatprep.subr.mxu0 0.0
    %573 = vmatpush1.msra.mxu0 0.0
    %574 = vmatprep.subr.mxu0 0.0
    %575 = vmatpush1.msra.mxu0 0.0
    %576 = vmatprep.subr.mxu0 0.0
    %577 = vmatpush1.msra.mxu0 0.0
    %578 = vmatprep.subr.mxu0 0.0
    %579 = vmatpush1.msra.mxu0 0.0
    %580 = vmatprep.subr.mxu0 0.0
    %581 = vmatpush1.msra.mxu0 0.0
    %582 = vmatprep.mubr.f32.mxu0 0.0
    %583 = vmatmul.mubr.f32.gmra.mrb[0].mxu0 %v191
    %v584 = vpop.f32.mrb[0].mxu0
    %v585 = vadd.f32 0.0, %v584
    %v586 = vpop.f32.mrb[0].mxu0
    %587 = vmatprep.mubr.f32.mxu0 0.0
    %588 = vmatmul.mubr.f32.gmra.mrb[0].mxu0 %v194
    %v589 = vpop.f32.mrb[0].mxu0
    %v590 = vadd.f32 0.0, %v589
    %v591 = vpop.f32.mrb[0].mxu0
    %592 = vdwg.mxu0
    %v593 = vmul.f32 %v83, %v585
    %v594 = vmul.f32 %v84, %v590
    %595 = vmatprep.subr.mxu0 0.0
    %596 = vmatpush1.msra.mxu0 %v593
    %597 = vmatprep.subr.mxu0 0.0
    %598 = vmatpush1.msra.mxu0 %v594
    %599 = vmatprep.subr.mxu0 0.0
    %600 = vmatpush1.msra.mxu0 0.0
    %601 = vmatprep.subr.mxu0 0.0
    %602 = vmatpush1.msra.mxu0 0.0
    %603 = vmatprep.subr.mxu0 0.0
    %604 = vmatpush1.msra.mxu0 0.0
    %605 = vmatprep.subr.mxu0 0.0
    %606 = vmatpush1.msra.mxu0 0.0
    %607 = vmatprep.subr.mxu0 0.0
    %608 = vmatpush1.msra.mxu0 0.0
    %609 = vmatprep.subr.mxu0 0.0
    %610 = vmatpush1.msra.mxu0 0.0
    %611 = vmatprep.subr.mxu0 0.0
    %612 = vmatpush1.msra.mxu0 0.0
    %613 = vmatprep.subr.mxu0 0.0
    %614 = vmatpush1.msra.mxu0 0.0
    %615 = vmatprep.subr.mxu0 0.0
    %616 = vmatpush1.msra.mxu0 0.0
    %617 = vmatprep.subr.mxu0 0.0
    %618 = vmatpush1.msra.mxu0 0.0
    %619 = vmatprep.subr.mxu0 0.0
    %620 = vmatpush1.msra.mxu0 0.0
    %621 = vmatprep.subr.mxu0 0.0
    %622 = vmatpush1.msra.mxu0 0.0
    %623 = vmatprep.subr.mxu0 0.0
    %624 = vmatpush1.msra.mxu0 0.0
    %625 = vmatprep.subr.mxu0 0.0
    %626 = vmatpush1.msra.mxu0 0.0
    %627 = vmatprep.subr.mxu0 0.0
    %628 = vmatpush1.msra.mxu0 0.0
    %629 = vmatprep.subr.mxu0 0.0
    %630 = vmatpush1.msra.mxu0 0.0
    %631 = vmatprep.subr.mxu0 0.0
    %632 = vmatpush1.msra.mxu0 0.0
    %633 = vmatprep.subr.mxu0 0.0
    %634 = vmatpush1.msra.mxu0 0.0
    %635 = vmatprep.subr.mxu0 0.0
    %636 = vmatpush1.msra.mxu0 0.0
    %637 = vmatprep.subr.mxu0 0.0
    %638 = vmatpush1.msra.mxu0 0.0
    %639 = vmatprep.subr.mxu0 0.0
    %640 = vmatpush1.msra.mxu0 0.0
    %641 = vmatprep.subr.mxu0 0.0
    %642 = vmatpush1.msra.mxu0 0.0
    %643 = vmatprep.subr.mxu0 0.0
    %644 = vmatpush1.msra.mxu0 0.0
    %645 = vmatprep.subr.mxu0 0.0
    %646 = vmatpush1.msra.mxu0 0.0
    %647 = vmatprep.subr.mxu0 0.0
    %648 = vmatpush1.msra.mxu0 0.0
    %649 = vmatprep.subr.mxu0 0.0
    %650 = vmatpush1.msra.mxu0 0.0
    %651 = vmatprep.subr.mxu0 0.0
    %652 = vmatpush1.msra.mxu0 0.0
    %653 = vmatprep.subr.mxu0 0.0
    %654 = vmatpush1.msra.mxu0 0.0
    %655 = vmatprep.subr.mxu0 0.0
    %656 = vmatpush1.msra.mxu0 0.0
    %657 = vmatprep.subr.mxu0 0.0
    %658 = vmatpush1.msra.mxu0 0.0
    %659 = vmatprep.mubr.f32.mxu0 0.0
    %660 = vmatmul.mubr.f32.gmra.mrb[0].mxu0 %v275
    %v661 = vpop.f32.mrb[0].mxu0
    %v662 = vadd.f32 0.0, %v661
    %v663 = vpop.f32.mrb[0].mxu0
    %664 = vdwg.mxu0
    %s665 = scalar_lea.vmem %s6, 1
    %v666 = vld [vmem:[%s665] sm:$0x1]
    %v668 = vlaneseq
    %v669 = vshrl.u32 %v668, 7
    %v670 = vsub.s32 0, %v669
    %v671 = vrot.slane %v666, %v670
    %v673 = vmul.f32 %v351, %v671
    %674 = vmatprep.subr.mxu0 0.0
    %675 = vmatpush1.msra.mxu0 %v85
    %676 = vmatprep.subr.mxu0 0.0
    %677 = vmatpush1.msra.mxu0 %v86
    %678 = vmatprep.subr.mxu0 0.0
    %679 = vmatpush1.msra.mxu0 %v87
    %680 = vmatprep.subr.mxu0 0.0
    %681 = vmatpush1.msra.mxu0 %v88
    %682 = vmatprep.subr.mxu0 0.0
    %683 = vmatpush1.msra.mxu0 %v89
    %684 = vmatprep.subr.mxu0 0.0
    %685 = vmatpush1.msra.mxu0 %v90
    %686 = vmatprep.subr.mxu0 0.0
    %687 = vmatpush1.msra.mxu0 %v91
    %688 = vmatprep.subr.mxu0 0.0
    %689 = vmatpush1.msra.mxu0 %v92
    %690 = vmatprep.subr.mxu0 0.0
    %691 = vmatpush1.msra.mxu0 %v93
    %692 = vmatprep.subr.mxu0 0.0
    %693 = vmatpush1.msra.mxu0 %v94
    %694 = vmatprep.subr.mxu0 0.0
    %695 = vmatpush1.msra.mxu0 %v95
    %696 = vmatprep.subr.mxu0 0.0
    %697 = vmatpush1.msra.mxu0 %v96
    %698 = vmatprep.subr.mxu0 0.0
    %699 = vmatpush1.msra.mxu0 %v97
    %700 = vmatprep.subr.mxu0 0.0
    %701 = vmatpush1.msra.mxu0 %v98
    %702 = vmatprep.subr.mxu0 0.0
    %703 = vmatpush1.msra.mxu0 %v99
    %704 = vmatprep.subr.mxu0 0.0
    %705 = vmatpush1.msra.mxu0 %v100
    %706 = vmatprep.subr.mxu0 0.0
    %707 = vmatpush1.msra.mxu0 0.0
    %708 = vmatprep.subr.mxu0 0.0
    %709 = vmatpush1.msra.mxu0 0.0
    %710 = vmatprep.subr.mxu0 0.0
    %711 = vmatpush1.msra.mxu0 0.0
    %712 = vmatprep.subr.mxu0 0.0
    %713 = vmatpush1.msra.mxu0 0.0
    %714 = vmatprep.subr.mxu0 0.0
    %715 = vmatpush1.msra.mxu0 0.0
    %716 = vmatprep.subr.mxu0 0.0
    %717 = vmatpush1.msra.mxu0 0.0
    %718 = vmatprep.subr.mxu0 0.0
    %719 = vmatpush1.msra.mxu0 0.0
    %720 = vmatprep.subr.mxu0 0.0
    %721 = vmatpush1.msra.mxu0 0.0
    %722 = vmatprep.subr.mxu0 0.0
    %723 = vmatpush1.msra.mxu0 0.0
    %724 = vmatprep.subr.mxu0 0.0
    %725 = vmatpush1.msra.mxu0 0.0
    %726 = vmatprep.subr.mxu0 0.0
    %727 = vmatpush1.msra.mxu0 0.0
    %728 = vmatprep.subr.mxu0 0.0
    %729 = vmatpush1.msra.mxu0 0.0
    %730 = vmatprep.subr.mxu0 0.0
    %731 = vmatpush1.msra.mxu0 0.0
    %732 = vmatprep.subr.mxu0 0.0
    %733 = vmatpush1.msra.mxu0 0.0
    %734 = vmatprep.subr.mxu0 0.0
    %735 = vmatpush1.msra.mxu0 0.0
    %736 = vmatprep.subr.mxu0 0.0
    %737 = vmatpush1.msra.mxu0 0.0
    %738 = vmatprep.mubr.f32.mxu0 0.0
    %739 = vmatmul.mubr.f32.gmra.mrb[0].mxu0 %v662
    %v740 = vpop.f32.mrb[0].mxu0
    %v741 = vadd.f32 %v673, %v740
    %v742 = vpop.f32.mrb[0].mxu0
    %743 = vdwg.mxu0
    %v744 = vmax.f32 %v741, 0.0
    %v745 = vld [vmem:[#allocation7] sm:$0xff]
    %v746 = vld [vmem:[#allocation7 + $0x8] sm:$0xff]
    %v747 = vld [vmem:[#allocation7 + $0x10] sm:$0xff]
    %v748 = vld [vmem:[#allocation7 + $0x18] sm:$0xff]
    %v749 = vld [vmem:[#allocation7 + $0x20] sm:$0xff]
    %v750 = vld [vmem:[#allocation7 + $0x28] sm:$0xff]
    %v751 = vld [vmem:[#allocation7 + $0x30] sm:$0xff]
    %v752 = vld [vmem:[#allocation7 + $0x38] sm:$0xff]
    %v753 = vld [vmem:[#allocation7 + $0x40] sm:$0xff]
    %v754 = vld [vmem:[#allocation7 + $0x48] sm:$0xff]
    %v755 = vld [vmem:[#allocation7 + $0x50] sm:$0xff]
    %v756 = vld [vmem:[#allocation7 + $0x58] sm:$0xff]
    %v757 = vld [vmem:[#allocation7 + $0x60] sm:$0xff]
    %v758 = vld [vmem:[#allocation7 + $0x68] sm:$0xff]
    %v759 = vld [vmem:[#allocation7 + $0x70] sm:$0xff]
    %v760 = vld [vmem:[#allocation7 + $0x78] sm:$0xff]
    %v761 = vld [vmem:[%s9] sm:$0x1]
    %v763 = vlaneseq
    %v764 = vshrl.u32 %v763, 7
    %v765 = vsub.s32 0, %v764
    %v766 = vrot.slane %v761, %v765
    %768 = vmatprep.subr.mxu0 0.0
    %769 = vmatpush1.msra.mxu0 %v745
    %770 = vmatprep.subr.mxu0 0.0
    %771 = vmatpush1.msra.mxu0 %v746
    %772 = vmatprep.subr.mxu0 0.0
    %773 = vmatpush1.msra.mxu0 %v747
    %774 = vmatprep.subr.mxu0 0.0
    %775 = vmatpush1.msra.mxu0 %v748
    %776 = vmatprep.subr.mxu0 0.0
    %777 = vmatpush1.msra.mxu0 %v749
    %778 = vmatprep.subr.mxu0 0.0
    %779 = vmatpush1.msra.mxu0 %v750
    %780 = vmatprep.subr.mxu0 0.0
    %781 = vmatpush1.msra.mxu0 %v751
    %782 = vmatprep.subr.mxu0 0.0
    %783 = vmatpush1.msra.mxu0 %v752
    %784 = vmatprep.subr.mxu0 0.0
    %785 = vmatpush1.msra.mxu0 %v753
    %786 = vmatprep.subr.mxu0 0.0
    %787 = vmatpush1.msra.mxu0 %v754
    %788 = vmatprep.subr.mxu0 0.0
    %789 = vmatpush1.msra.mxu0 %v755
    %790 = vmatprep.subr.mxu0 0.0
    %791 = vmatpush1.msra.mxu0 %v756
    %792 = vmatprep.subr.mxu0 0.0
    %793 = vmatpush1.msra.mxu0 %v757
    %794 = vmatprep.subr.mxu0 0.0
    %795 = vmatpush1.msra.mxu0 %v758
    %796 = vmatprep.subr.mxu0 0.0
    %797 = vmatpush1.msra.mxu0 %v759
    %798 = vmatprep.subr.mxu0 0.0
    %799 = vmatpush1.msra.mxu0 %v760
    %800 = vmatprep.subr.mxu0 0.0
    %801 = vmatpush1.msra.mxu0 0.0
    %802 = vmatprep.subr.mxu0 0.0
    %803 = vmatpush1.msra.mxu0 0.0
    %804 = vmatprep.subr.mxu0 0.0
    %805 = vmatpush1.msra.mxu0 0.0
    %806 = vmatprep.subr.mxu0 0.0
    %807 = vmatpush1.msra.mxu0 0.0
    %808 = vmatprep.subr.mxu0 0.0
    %809 = vmatpush1.msra.mxu0 0.0
    %810 = vmatprep.subr.mxu0 0.0
    %811 = vmatpush1.msra.mxu0 0.0
    %812 = vmatprep.subr.mxu0 0.0
    %813 = vmatpush1.msra.mxu0 0.0
    %814 = vmatprep.subr.mxu0 0.0
    %815 = vmatpush1.msra.mxu0 0.0
    %816 = vmatprep.subr.mxu0 0.0
    %817 = vmatpush1.msra.mxu0 0.0
    %818 = vmatprep.subr.mxu0 0.0
    %819 = vmatpush1.msra.mxu0 0.0
    %820 = vmatprep.subr.mxu0 0.0
    %821 = vmatpush1.msra.mxu0 0.0
    %822 = vmatprep.subr.mxu0 0.0
    %823 = vmatpush1.msra.mxu0 0.0
    %824 = vmatprep.subr.mxu0 0.0
    %825 = vmatpush1.msra.mxu0 0.0
    %826 = vmatprep.subr.mxu0 0.0
    %827 = vmatpush1.msra.mxu0 0.0
    %828 = vmatprep.subr.mxu0 0.0
    %829 = vmatpush1.msra.mxu0 0.0
    %830 = vmatprep.subr.mxu0 0.0
    %831 = vmatpush1.msra.mxu0 0.0
    %832 = vmatprep.mubr.f32.mxu0 0.0
    %833 = vmatmul.mubr.f32.gmra.mrb[0].mxu0 %v744
    %v834 = vpop.f32.mrb[0].mxu0
    %v835 = vadd.f32 %v766, %v834
    %v836 = vpop.f32.mrb[0].mxu0
    %837 = vdwg.mxu0
    %838 = vst [vmem:[#allocation8] sm:$0xff] %v835
    // Predicated region
    $region54: #{tpu_custom_call.1} parent=1 // pred_check
      _
    $region55: #{tpu_custom_call.1} parent=1 // pred_check_branch
      %840 = sbr.rel (0) target = $region57
    $region56: #{tpu_custom_call.1} parent=1 // pred_region
      %s842 = ssub.s32 128, 128
      %843 = vsyncadd [#allocation4], %s842
      %s845 = sshll.u32 [#allocation8], 4
      %s846 = int_to_ptr.vmem [resolvable:$true] %s845
      %848 = dma.vmem_to_hbm [thread:$0]  %s846, 128, %s10, [#allocation4]
    $region57: #{tpu_custom_call.1} parent=1 // pred_fallthru
      _
    // Predicated region
    $region58: #{tpu_custom_call.1} parent=1 // pred_check
      _
    $region59: #{tpu_custom_call.1} parent=1 // pred_check_branch
      %850 = sbr.rel (0) target = $region61
    $region60: #{tpu_custom_call.1} parent=1 // pred_region
      %851 = dma.done [#allocation4], 128
    $region61: #{tpu_custom_call.1} parent=1 // pred_fallthru
      _
    %852 = vsyncpa [#allocation3], 1
    %853 = vsyncpa [#allocation6], 1
    %854 = vsyncpa [#allocation4], 1

</llo_original>
